<compile_context>
chip_gen: v7x
topology: tpu7x:2x2x1
jax: 0.10.0
libtpu: 0.0.40
codegen_flags: <defaults>
</compile_context>

<pallas_src>
import jax
import jax.numpy as jnp
from jax.experimental import pallas as pl

# Module hyper-parameters (from the reference script).
BATCH_SIZE = 64
INPUT_SIZE = 26
HIDDEN_SIZE = 10
OUTPUT_SIZE = 2
FUSED_OUT = HIDDEN_SIZE + OUTPUT_SIZE   # 12 live lanes: [hidden | logits]
PAD = 128                               # lane-dense fused slab width

assert OUTPUT_SIZE == 2, "closed-form 2-class log-softmax below assumes O == 2"


def _lse_2class(z):
    """logsumexp over the two logit lanes of the padded slab.

    z: [B, PAD] with logits in lanes [HIDDEN_SIZE, HIDDEN_SIZE + 2).
    Returns [B, 1]; log_probs = logits - lse. Purely elementwise (no
    cross-lane reductions, no exp of non-logit lanes).
    """
    z0 = z[:, HIDDEN_SIZE:HIDDEN_SIZE + 1]
    z1 = z[:, HIDDEN_SIZE + 1:HIDDEN_SIZE + 2]
    m = jnp.maximum(z0, z1)
    return m + jnp.log(jnp.exp(z0 - m) + jnp.exp(z1 - m))


def rnn_cell_kernel(x_ref, h_ref, w_x_ref, w_hr_ref, b_ref, out_ref, hid_ref):
    """Single cell step. Writes log_probs [B, O] and new hidden [B, H] directly."""
    z = (jnp.dot(x_ref[...], w_x_ref[...], preferred_element_type=jnp.float32)
         + jnp.dot(h_ref[...], w_hr_ref[...], preferred_element_type=jnp.float32)
         + b_ref[...])                                          # [B, PAD]
    lse = _lse_2class(z)
    hid_ref[...] = z[:, :HIDDEN_SIZE].astype(hid_ref.dtype)
    out_ref[...] = (z[:, HIDDEN_SIZE:FUSED_OUT] - lse).astype(out_ref.dtype)


def rnn_scan_kernel(xs_ref, h0_ref, w_x_ref, w_hp_ref, b_ref, out_ref):
    """Whole T-step scan in one invocation (no grid).

    xs_ref  : [T, B, I]   fully VMEM-resident
    h0_ref  : [B, PAD]    h0 lane-padded with zeros
    w_hp_ref: [PAD, PAD]  rows >= HIDDEN_SIZE are zero, so the padded slab z
                          can be fed straight back into the h-matmul as carry
    out_ref : [T, B, PAD] lane-dense fused slab: lanes [0,H) = new hidden,
                          lanes [H,H+O) = log_softmax(logits), rest zero.
    """
    n_t, batch = xs_ref.shape[0], xs_ref.shape[1]
    w_x = w_x_ref[...]
    w_hp = w_hp_ref[...]
    b = b_ref[...]

    # Hoisted once — JAX does not CSE broadcast_in_dim across the unrolled loop.
    col = jax.lax.broadcasted_iota(jnp.int32, (batch, PAD), 1)
    logit_mask = jnp.logical_and(col >= HIDDEN_SIZE, col < FUSED_OUT)

    def step(t, h_pad):
        x_t = xs_ref[t]                                         # [B, I]
        z = (jnp.dot(x_t, w_x, preferred_element_type=jnp.float32)
             + jnp.dot(h_pad, w_hp, preferred_element_type=jnp.float32)
             + b)                                               # [B, PAD]
        lse = _lse_2class(z)
        out_ref[t] = jnp.where(logit_mask, z - lse, z).astype(out_ref.dtype)
        # Carry the raw slab: lanes [0,H) are the new hidden; lanes >= H hit
        # zero rows of w_hp next step, so they contribute nothing.
        return z

    jax.lax.fori_loop(0, n_t, step, h0_ref[...], unroll=True)


def prepare_params(w_i2h, b_i2h, w_i2o, b_i2o):
    """One-time layout prep (hoisted out of any per-step path).

    PyTorch stores W as [out, in]; we fuse i2h/i2o into one [C, H+O] matrix,
    lane-pad the output dim to PAD=128 (dense stores), split its rows into an
    x-part [I, PAD] and h-part [H, PAD], and also build a sublane-padded
    [PAD, PAD] h-part (zero rows >= H) so the scan can carry the padded slab.
    """
    w_fused = jnp.concatenate([w_i2h, w_i2o], axis=0).T          # [C, H+O]
    w_fused = jnp.pad(w_fused, ((0, 0), (0, PAD - FUSED_OUT)))   # [C, PAD]
    w_x = w_fused[:INPUT_SIZE]                                   # [I, PAD]
    w_hr = w_fused[INPUT_SIZE:]                                  # [H, PAD]
    w_hp = jnp.pad(w_hr, ((0, PAD - HIDDEN_SIZE), (0, 0)))       # [PAD, PAD]
    b = jnp.pad(jnp.concatenate([b_i2h, b_i2o]),
                (0, PAD - FUSED_OUT)).reshape(1, PAD)            # [1, PAD]
    return w_x, w_hr, w_hp, b


def rnn_cell_forward(x, h, w_x, w_hr, b):
    """One RNN cell step (the module's forward). Returns (output, hidden)."""
    B = x.shape[0]
    out, hid = pl.pallas_call(
        rnn_cell_kernel,
        out_shape=(jax.ShapeDtypeStruct((B, OUTPUT_SIZE), jnp.float32),
                   jax.ShapeDtypeStruct((B, HIDDEN_SIZE), jnp.float32)),
        in_specs=[
            pl.BlockSpec((B, INPUT_SIZE), lambda: (0, 0)),
            pl.BlockSpec((B, HIDDEN_SIZE), lambda: (0, 0)),
            pl.BlockSpec((INPUT_SIZE, PAD), lambda: (0, 0)),
            pl.BlockSpec((HIDDEN_SIZE, PAD), lambda: (0, 0)),
            pl.BlockSpec((1, PAD), lambda: (0, 0)),
        ],
        out_specs=(pl.BlockSpec((B, OUTPUT_SIZE), lambda: (0, 0)),
                   pl.BlockSpec((B, HIDDEN_SIZE), lambda: (0, 0))),
    )(x, h, w_x, w_hr, b)
    return out, hid


def rnn_cell_scan(xs, h0, w_x, w_hp, b):
    """Apply the cell over a [T, B, I] sequence inside ONE grid-less pallas_call.

    Everything (xs, weights, bias, output slab) is VMEM-resident for the whole
    call; the hidden state is carried in registers by the in-kernel loop.
    Returns (outputs [T, B, O], h_T [B, H]).
    """
    T, B, _ = xs.shape
    h0_pad = jnp.pad(h0, ((0, 0), (0, PAD - HIDDEN_SIZE)))       # one-time pad
    slab = pl.pallas_call(
        rnn_scan_kernel,
        out_shape=jax.ShapeDtypeStruct((T, B, PAD), jnp.float32),
        in_specs=[
            pl.BlockSpec((T, B, INPUT_SIZE), lambda: (0, 0, 0)),  # xs (resident)
            pl.BlockSpec((B, PAD), lambda: (0, 0)),               # h0 padded
            pl.BlockSpec((INPUT_SIZE, PAD), lambda: (0, 0)),      # W_x
            pl.BlockSpec((PAD, PAD), lambda: (0, 0)),             # W_h padded
            pl.BlockSpec((1, PAD), lambda: (0, 0)),               # bias
        ],
        out_specs=pl.BlockSpec((T, B, PAD), lambda: (0, 0, 0)),   # lane-dense
    )(xs, h0_pad, w_x, w_hp, b)
    outputs = slab[:, :, HIDDEN_SIZE:FUSED_OUT]    # [T, B, O] log-probs
    final_hidden = slab[-1, :, :HIDDEN_SIZE]       # [B, H]
    return outputs, final_hidden


def init_params(key):
    """Deterministic parameter init (PyTorch Linear-style uniform)."""
    c = INPUT_SIZE + HIDDEN_SIZE
    k1, k2, k3, k4 = jax.random.split(key, 4)
    bound = 1.0 / jnp.sqrt(jnp.float32(c))
    w_i2h = jax.random.uniform(k1, (HIDDEN_SIZE, c), jnp.float32, -bound, bound)
    b_i2h = jax.random.uniform(k2, (HIDDEN_SIZE,), jnp.float32, -bound, bound)
    w_i2o = jax.random.uniform(k3, (OUTPUT_SIZE, c), jnp.float32, -bound, bound)
    b_i2o = jax.random.uniform(k4, (OUTPUT_SIZE,), jnp.float32, -bound, bound)
    return w_i2h, b_i2h, w_i2o, b_i2o


if __name__ == "__main__":
    key = jax.random.PRNGKey(0)
    kp, kx, ks = jax.random.split(key, 3)

    w_i2h, b_i2h, w_i2o, b_i2o = init_params(kp)
    w_x, w_hr, w_hp, b = prepare_params(w_i2h, b_i2h, w_i2o, b_i2o)  # one-time

    # input = randint(0, 10, (batch, input_size)).float();  hidden = zeros
    x = jax.random.randint(kx, (BATCH_SIZE, INPUT_SIZE), 0, 10).astype(jnp.float32)
    h = jnp.zeros((BATCH_SIZE, HIDDEN_SIZE), jnp.float32)

    # --- single cell step (the module's forward) ----------------------------
    out, new_h = rnn_cell_forward(x, h, w_x, w_hr, b)
    out = jax.block_until_ready(out)
    new_h = jax.block_until_ready(new_h)

    combined = jnp.concatenate([x, h], axis=1)
    ref_h = combined @ w_i2h.T + b_i2h
    ref_out = jax.nn.log_softmax(combined @ w_i2o.T + b_i2o, axis=1)
    assert jnp.allclose(out, ref_out, atol=1e-4, rtol=1e-4), "output mismatch"
    assert jnp.allclose(new_h, ref_h, atol=1e-4, rtol=1e-4), "hidden mismatch"

    # --- full sequence scanned inside one grid-less pallas_call --------------
    T = 8
    xs = jax.random.randint(ks, (T, BATCH_SIZE, INPUT_SIZE), 0, 10).astype(jnp.float32)
    outs, h_T = rnn_cell_scan(xs, h, w_x, w_hp, b)
    outs = jax.block_until_ready(outs)
    h_T = jax.block_until_ready(h_T)

    ref_hh = h
    ref_outs = []
    for t in range(T):
        comb_t = jnp.concatenate([xs[t], ref_hh], axis=1)
        ref_outs.append(jax.nn.log_softmax(comb_t @ w_i2o.T + b_i2o, axis=1))
        ref_hh = comb_t @ w_i2h.T + b_i2h
    ref_outs = jnp.stack(ref_outs)
    assert jnp.allclose(outs, ref_outs, atol=1e-3, rtol=1e-4), "scan output mismatch"
    assert jnp.allclose(h_T, ref_hh, atol=1e-3, rtol=1e-4), "scan hidden mismatch"

    print("KERNEL_OK")
</pallas_src>

<mosaic_0001>
module attributes {stable_mosaic.version = 11 : i64} {
  func.func @rnn_cell_kernel(%arg0: memref<64x26xf32, #tpu.memory_space<vmem>>, %arg1: memref<64x10xf32, #tpu.memory_space<vmem>>, %arg2: memref<26x128xf32, #tpu.memory_space<vmem>>, %arg3: memref<10x128xf32, #tpu.memory_space<vmem>>, %arg4: memref<1x128xf32, #tpu.memory_space<vmem>>, %arg5: memref<64x2xf32, #tpu.memory_space<vmem>>, %arg6: memref<64x10xf32, #tpu.memory_space<vmem>>) attributes {dimension_semantics = [], scalar_prefetch = 0 : i64, scratch_operands = 0 : i64, tpu.core_type = #tpu.core_type<tc>} {
    %c0 = arith.constant 0 : index
    %c0_0 = arith.constant 0 : index
    %0 = vector.load %arg0[%c0, %c0_0] : memref<64x26xf32, #tpu.memory_space<vmem>>, vector<64x26xf32>
    %c0_1 = arith.constant 0 : index
    %c0_2 = arith.constant 0 : index
    %1 = vector.load %arg2[%c0_1, %c0_2] : memref<26x128xf32, #tpu.memory_space<vmem>>, vector<26x128xf32>
    %cst = arith.constant dense<0.000000e+00> : vector<64x128xf32>
    %2 = tpu.matmul %0, %1, %cst {dimension_numbers = #tpu.dot_dimension_numbers<[1], [0], [0], [1], [0, 0, 1, 1], [], []>} : vector<64x26xf32>, vector<26x128xf32>, vector<64x128xf32> -> vector<64x128xf32>
    %c0_3 = arith.constant 0 : index
    %c0_4 = arith.constant 0 : index
    %3 = vector.load %arg1[%c0_3, %c0_4] : memref<64x10xf32, #tpu.memory_space<vmem>>, vector<64x10xf32>
    %c0_5 = arith.constant 0 : index
    %c0_6 = arith.constant 0 : index
    %4 = vector.load %arg3[%c0_5, %c0_6] : memref<10x128xf32, #tpu.memory_space<vmem>>, vector<10x128xf32>
    %cst_7 = arith.constant dense<0.000000e+00> : vector<64x128xf32>
    %5 = tpu.matmul %3, %4, %cst_7 {dimension_numbers = #tpu.dot_dimension_numbers<[1], [0], [0], [1], [0, 0, 1, 1], [], []>} : vector<64x10xf32>, vector<10x128xf32>, vector<64x128xf32> -> vector<64x128xf32>
    %6 = arith.addf %2, %5 : vector<64x128xf32>
    %c0_8 = arith.constant 0 : index
    %c0_9 = arith.constant 0 : index
    %7 = vector.load %arg4[%c0_8, %c0_9] : memref<1x128xf32, #tpu.memory_space<vmem>>, vector<1x128xf32>
    %8 = vector.broadcast %7 : vector<1x128xf32> to vector<64x128xf32>
    %9 = arith.addf %6, %8 : vector<64x128xf32>
    %10 = vector.extract_strided_slice %9 {offsets = [0, 10], sizes = [64, 1], strides = [1, 1]} : vector<64x128xf32> to vector<64x1xf32>
    %11 = vector.extract_strided_slice %9 {offsets = [0, 11], sizes = [64, 1], strides = [1, 1]} : vector<64x128xf32> to vector<64x1xf32>
    %12 = arith.maximumf %10, %11 : vector<64x1xf32>
    %13 = arith.subf %10, %12 : vector<64x1xf32>
    %14 = math.exp %13 : vector<64x1xf32>
    %15 = arith.subf %11, %12 : vector<64x1xf32>
    %16 = math.exp %15 : vector<64x1xf32>
    %17 = arith.addf %14, %16 : vector<64x1xf32>
    %18 = math.log %17 : vector<64x1xf32>
    %19 = arith.addf %12, %18 : vector<64x1xf32>
    %20 = vector.extract_strided_slice %9 {offsets = [0, 0], sizes = [64, 10], strides = [1, 1]} : vector<64x128xf32> to vector<64x10xf32>
    %c0_10 = arith.constant 0 : index
    %c0_11 = arith.constant 0 : index
    %21 = vector.load %arg6[%c0_10, %c0_11] : memref<64x10xf32, #tpu.memory_space<vmem>>, vector<64x10xf32>
    tpu.vector_store %arg6[%c0_10, %c0_11], %20 {strides = array<i32>} : memref<64x10xf32, #tpu.memory_space<vmem>>, vector<64x10xf32>,
    %22 = vector.extract_strided_slice %9 {offsets = [0, 10], sizes = [64, 2], strides = [1, 1]} : vector<64x128xf32> to vector<64x2xf32>
    %23 = vector.broadcast %19 : vector<64x1xf32> to vector<64x2xf32>
    %24 = arith.subf %22, %23 : vector<64x2xf32>
    %c0_12 = arith.constant 0 : index
    %c0_13 = arith.constant 0 : index
    %25 = vector.load %arg5[%c0_12, %c0_13] : memref<64x2xf32, #tpu.memory_space<vmem>>, vector<64x2xf32>
    tpu.vector_store %arg5[%c0_12, %c0_13], %24 {strides = array<i32>} : memref<64x2xf32, #tpu.memory_space<vmem>>, vector<64x2xf32>,
    return
  }
}

</mosaic_0001>

<llo_original>
// kernel: tpu_custom_call.1
$region0: #{tpu_custom_call.1}
  #allocation0 [shape = 'u32[]', space=smem, size = 0x4, offset = 0x4, fixed_abs, tag = 'smem constant byte address 0x4 - core index']
  #allocation1 [shape = 'u32[144,128]{1,0:T(1,128)}', space=vmem, size = 0x12000, scoped, tag = 'internal scratch']
  %s0 = inlined_call_operand.vmem [shape: f32[64,26], index: 0, kind: input, shape index: {}]
  %s1 = inlined_call_operand.vmem [shape: f32[64,10], index: 1, kind: input, shape index: {}]
  %s2 = inlined_call_operand.vmem [shape: f32[26,128], index: 2, kind: input, shape index: {}]
  %s3 = inlined_call_operand.vmem [shape: f32[10,128], index: 3, kind: input, shape index: {}]
  %s4 = inlined_call_operand.vmem [shape: f32[1,128], index: 4, kind: input, shape index: {}]
  %s5 = inlined_call_operand.vmem [shape: f32[64,2], index: 5, kind: output, shape index: {0}]
  %s6 = inlined_call_operand.vmem [shape: f32[64,10], index: 6, kind: output, shape index: {1}]
  %7 = xla_tuple %s5, %s6
  %s8 = sld [smem:[#allocation0]]
  $region38: #{tpu_custom_call.1} parent=0
    _
  %s10 = ssub.s32 1, %s8
  %s11 = scalar_select 0, %s10, %s8
  // Predicated region
  $region2: #{tpu_custom_call.1} parent=0 // pred_check
    _
  $region3: #{tpu_custom_call.1} parent=0 // pred_check_branch
    %13 = sbr.rel (0) target = $region5
  $region4: #{tpu_custom_call.1} parent=0 // pred_region
    _
  $region5: #{tpu_custom_call.1} parent=0 // pred_fallthru
    _
  // Predicated region
  $region6: #{tpu_custom_call.1} parent=0 // pred_check
    _
  $region7: #{tpu_custom_call.1} parent=0 // pred_check_branch
    %15 = sbr.rel (0) target = $region9
  $region8: #{tpu_custom_call.1} parent=0 // pred_region
    _
  $region9: #{tpu_custom_call.1} parent=0 // pred_fallthru
    _
  // Predicated region
  $region10: #{tpu_custom_call.1} parent=0 // pred_check
    _
  $region11: #{tpu_custom_call.1} parent=0 // pred_check_branch
    %17 = sbr.rel (0) target = $region13
  $region12: #{tpu_custom_call.1} parent=0 // pred_region
    _
  $region13: #{tpu_custom_call.1} parent=0 // pred_fallthru
    _
  // Predicated region
  $region14: #{tpu_custom_call.1} parent=0 // pred_check
    _
  $region15: #{tpu_custom_call.1} parent=0 // pred_check_branch
    %19 = sbr.rel (0) target = $region17
  $region16: #{tpu_custom_call.1} parent=0 // pred_region
    _
  $region17: #{tpu_custom_call.1} parent=0 // pred_fallthru
    _
  // Predicated region
  $region18: #{tpu_custom_call.1} parent=0 // pred_check
    _
  $region19: #{tpu_custom_call.1} parent=0 // pred_check_branch
    %21 = sbr.rel (0) target = $region21
  $region20: #{tpu_custom_call.1} parent=0 // pred_region
    _
  $region21: #{tpu_custom_call.1} parent=0 // pred_fallthru
    _
  %v22 = vld [vmem:[%s0] sm:$0xff]
  %v23 = vld [vmem:[%s0 + $0x8] sm:$0xff]
  %v24 = vld [vmem:[%s0 + $0x10] sm:$0xff]
  %v25 = vld [vmem:[%s0 + $0x18] sm:$0xff]
  %v26 = vld [vmem:[%s0 + $0x20] sm:$0xff]
  %v27 = vld [vmem:[%s0 + $0x28] sm:$0xff]
  %v28 = vld [vmem:[%s0 + $0x30] sm:$0xff]
  %v29 = vld [vmem:[%s0 + $0x38] sm:$0xff]
  %v30 = vld [vmem:[%s2] sm:$0xff]
  %v31 = vld [vmem:[%s2 + $0x8] sm:$0xff]
  %v32 = vld [vmem:[%s2 + $0x10] sm:$0xff]
  %v33 = vld [vmem:[%s2 + $0x18] sm:$0x3]
  %v34 = vld [vmem:[%s1] sm:$0xff]
  %v35 = vld [vmem:[%s1 + $0x8] sm:$0xff]
  %v36 = vld [vmem:[%s1 + $0x10] sm:$0xff]
  %v37 = vld [vmem:[%s1 + $0x18] sm:$0xff]
  %v38 = vld [vmem:[%s1 + $0x20] sm:$0xff]
  %v39 = vld [vmem:[%s1 + $0x28] sm:$0xff]
  %v40 = vld [vmem:[%s1 + $0x30] sm:$0xff]
  %v41 = vld [vmem:[%s1 + $0x38] sm:$0xff]
  %v42 = vld [vmem:[%s3] sm:$0xff]
  %v43 = vld [vmem:[%s3 + $0x8] sm:$0x3]
  %vm44 = vcmask 80896
  %v46 = vsel %vm44, %v34, 0
  %v49 = vsel %vm44, %v35, 0
  %v52 = vsel %vm44, %v36, 0
  %v55 = vsel %vm44, %v37, 0
  %v58 = vsel %vm44, %v38, 0
  %v61 = vsel %vm44, %v39, 0
  %v64 = vsel %vm44, %v40, 0
  %v67 = vsel %vm44, %v41, 0
  %vm69 = vcmask 1041408
  %v71 = vsel %vm69, %v43, 0
  %73 = vmatprep.subr.mxu0 0.0
  %74 = vmatpush1.msra.mxu0 %v42
  %75 = vmatprep.subr.mxu0 0.0
  %76 = vmatpush1.msra.mxu0 %v71
  %77 = vmatprep.subr.mxu0 0.0
  %78 = vmatpush1.msra.mxu0 0.0
  %79 = vmatprep.subr.mxu0 0.0
  %80 = vmatpush1.msra.mxu0 0.0
  %81 = vmatprep.subr.mxu0 0.0
  %82 = vmatpush1.msra.mxu0 0.0
  %83 = vmatprep.subr.mxu0 0.0
  %84 = vmatpush1.msra.mxu0 0.0
  %85 = vmatprep.subr.mxu0 0.0
  %86 = vmatpush1.msra.mxu0 0.0
  %87 = vmatprep.subr.mxu0 0.0
  %88 = vmatpush1.msra.mxu0 0.0
  %89 = vmatprep.subr.mxu0 0.0
  %90 = vmatpush1.msra.mxu0 0.0
  %91 = vmatprep.subr.mxu0 0.0
  %92 = vmatpush1.msra.mxu0 0.0
  %93 = vmatprep.subr.mxu0 0.0
  %94 = vmatpush1.msra.mxu0 0.0
  %95 = vmatprep.subr.mxu0 0.0
  %96 = vmatpush1.msra.mxu0 0.0
  %97 = vmatprep.subr.mxu0 0.0
  %98 = vmatpush1.msra.mxu0 0.0
  %99 = vmatprep.subr.mxu0 0.0
  %100 = vmatpush1.msra.mxu0 0.0
  %101 = vmatprep.subr.mxu0 0.0
  %102 = vmatpush1.msra.mxu0 0.0
  %103 = vmatprep.subr.mxu0 0.0
  %104 = vmatpush1.msra.mxu0 0.0
  %105 = vmatprep.subr.mxu0 0.0
  %106 = vmatpush1.msra.mxu0 0.0
  %107 = vmatprep.subr.mxu0 0.0
  %108 = vmatpush1.msra.mxu0 0.0
  %109 = vmatprep.subr.mxu0 0.0
  %110 = vmatpush1.msra.mxu0 0.0
  %111 = vmatprep.subr.mxu0 0.0
  %112 = vmatpush1.msra.mxu0 0.0
  %113 = vmatprep.subr.mxu0 0.0
  %114 = vmatpush1.msra.mxu0 0.0
  %115 = vmatprep.subr.mxu0 0.0
  %116 = vmatpush1.msra.mxu0 0.0
  %117 = vmatprep.subr.mxu0 0.0
  %118 = vmatpush1.msra.mxu0 0.0
  %119 = vmatprep.subr.mxu0 0.0
  %120 = vmatpush1.msra.mxu0 0.0
  %121 = vmatprep.subr.mxu0 0.0
  %122 = vmatpush1.msra.mxu0 0.0
  %123 = vmatprep.subr.mxu0 0.0
  %124 = vmatpush1.msra.mxu0 0.0
  %125 = vmatprep.subr.mxu0 0.0
  %126 = vmatpush1.msra.mxu0 0.0
  %127 = vmatprep.subr.mxu0 0.0
  %128 = vmatpush1.msra.mxu0 0.0
  %129 = vmatprep.subr.mxu0 0.0
  %130 = vmatpush1.msra.mxu0 0.0
  %131 = vmatprep.subr.mxu0 0.0
  %132 = vmatpush1.msra.mxu0 0.0
  %133 = vmatprep.subr.mxu0 0.0
  %134 = vmatpush1.msra.mxu0 0.0
  %135 = vmatprep.subr.mxu0 0.0
  %136 = vmatpush1.msra.mxu0 0.0
  %137 = vmatprep.mubr.f32.mxu0 0.0
  %138 = vmatmul.mubr.f32.gmra.mrb[0].mxu0 %v46
  %v139 = vpop.f32.mrb[0].mxu0
  %v140 = vadd.f32 0.0, %v139
  %v141 = vpop.f32.mrb[0].mxu0
  %142 = vmatprep.mubr.f32.mxu0 0.0
  %143 = vmatmul.mubr.f32.gmra.mrb[0].mxu0 %v49
  %v144 = vpop.f32.mrb[0].mxu0
  %v145 = vadd.f32 0.0, %v144
  %v146 = vpop.f32.mrb[0].mxu0
  %147 = vmatprep.mubr.f32.mxu0 0.0
  %148 = vmatmul.mubr.f32.gmra.mrb[0].mxu0 %v52
  %v149 = vpop.f32.mrb[0].mxu0
  %v150 = vadd.f32 0.0, %v149
  %v151 = vpop.f32.mrb[0].mxu0
  %152 = vmatprep.mubr.f32.mxu0 0.0
  %153 = vmatmul.mubr.f32.gmra.mrb[0].mxu0 %v55
  %v154 = vpop.f32.mrb[0].mxu0
  %v155 = vadd.f32 0.0, %v154
  %v156 = vpop.f32.mrb[0].mxu0
  %157 = vmatprep.mubr.f32.mxu0 0.0
  %158 = vmatmul.mubr.f32.gmra.mrb[0].mxu0 %v58
  %v159 = vpop.f32.mrb[0].mxu0
  %v160 = vadd.f32 0.0, %v159
  %v161 = vpop.f32.mrb[0].mxu0
  %162 = vmatprep.mubr.f32.mxu0 0.0
  %163 = vmatmul.mubr.f32.gmra.mrb[0].mxu0 %v61
  %v164 = vpop.f32.mrb[0].mxu0
  %v165 = vadd.f32 0.0, %v164
  %v166 = vpop.f32.mrb[0].mxu0
  %167 = vmatprep.mubr.f32.mxu0 0.0
  %168 = vmatmul.mubr.f32.gmra.mrb[0].mxu0 %v64
  %v169 = vpop.f32.mrb[0].mxu0
  %v170 = vadd.f32 0.0, %v169
  %v171 = vpop.f32.mrb[0].mxu0
  %172 = vmatprep.mubr.f32.mxu0 0.0
  %173 = vmatmul.mubr.f32.gmra.mrb[0].mxu0 %v67
  %v174 = vpop.f32.mrb[0].mxu0
  %v175 = vadd.f32 0.0, %v174
  %v176 = vpop.f32.mrb[0].mxu0
  %177 = vdwg.mxu0
  %vm178 = vcmask 211968
  %v180 = vsel %vm178, %v22, 0
  %v183 = vsel %vm178, %v23, 0
  %v186 = vsel %vm178, %v24, 0
  %v189 = vsel %vm178, %v25, 0
  %v192 = vsel %vm178, %v26, 0
  %v195 = vsel %vm178, %v27, 0
  %v198 = vsel %vm178, %v28, 0
  %v201 = vsel %vm178, %v29, 0
  %v204 = vsel %vm69, %v33, 0
  %206 = vmatprep.subr.mxu0 0.0
  %207 = vmatpush1.msra.mxu0 %v30
  %208 = vmatprep.subr.mxu0 0.0
  %209 = vmatpush1.msra.mxu0 %v31
  %210 = vmatprep.subr.mxu0 0.0
  %211 = vmatpush1.msra.mxu0 %v32
  %212 = vmatprep.subr.mxu0 0.0
  %213 = vmatpush1.msra.mxu0 %v204
  %214 = vmatprep.subr.mxu0 0.0
  %215 = vmatpush1.msra.mxu0 0.0
  %216 = vmatprep.subr.mxu0 0.0
  %217 = vmatpush1.msra.mxu0 0.0
  %218 = vmatprep.subr.mxu0 0.0
  %219 = vmatpush1.msra.mxu0 0.0
  %220 = vmatprep.subr.mxu0 0.0
  %221 = vmatpush1.msra.mxu0 0.0
  %222 = vmatprep.subr.mxu0 0.0
  %223 = vmatpush1.msra.mxu0 0.0
  %224 = vmatprep.subr.mxu0 0.0
  %225 = vmatpush1.msra.mxu0 0.0
  %226 = vmatprep.subr.mxu0 0.0
  %227 = vmatpush1.msra.mxu0 0.0
  %228 = vmatprep.subr.mxu0 0.0
  %229 = vmatpush1.msra.mxu0 0.0
  %230 = vmatprep.subr.mxu0 0.0
  %231 = vmatpush1.msra.mxu0 0.0
  %232 = vmatprep.subr.mxu0 0.0
  %233 = vmatpush1.msra.mxu0 0.0
  %234 = vmatprep.subr.mxu0 0.0
  %235 = vmatpush1.msra.mxu0 0.0
  %236 = vmatprep.subr.mxu0 0.0
  %237 = vmatpush1.msra.mxu0 0.0
  %238 = vmatprep.subr.mxu0 0.0
  %239 = vmatpush1.msra.mxu0 0.0
  %240 = vmatprep.subr.mxu0 0.0
  %241 = vmatpush1.msra.mxu0 0.0
  %242 = vmatprep.subr.mxu0 0.0
  %243 = vmatpush1.msra.mxu0 0.0
  %244 = vmatprep.subr.mxu0 0.0
  %245 = vmatpush1.msra.mxu0 0.0
  %246 = vmatprep.subr.mxu0 0.0
  %247 = vmatpush1.msra.mxu0 0.0
  %248 = vmatprep.subr.mxu0 0.0
  %249 = vmatpush1.msra.mxu0 0.0
  %250 = vmatprep.subr.mxu0 0.0
  %251 = vmatpush1.msra.mxu0 0.0
  %252 = vmatprep.subr.mxu0 0.0
  %253 = vmatpush1.msra.mxu0 0.0
  %254 = vmatprep.subr.mxu0 0.0
  %255 = vmatpush1.msra.mxu0 0.0
  %256 = vmatprep.subr.mxu0 0.0
  %257 = vmatpush1.msra.mxu0 0.0
  %258 = vmatprep.subr.mxu0 0.0
  %259 = vmatpush1.msra.mxu0 0.0
  %260 = vmatprep.subr.mxu0 0.0
  %261 = vmatpush1.msra.mxu0 0.0
  %262 = vmatprep.subr.mxu0 0.0
  %263 = vmatpush1.msra.mxu0 0.0
  %264 = vmatprep.subr.mxu0 0.0
  %265 = vmatpush1.msra.mxu0 0.0
  %266 = vmatprep.subr.mxu0 0.0
  %267 = vmatpush1.msra.mxu0 0.0
  %268 = vmatprep.subr.mxu0 0.0
  %269 = vmatpush1.msra.mxu0 0.0
  %270 = vmatprep.mubr.f32.mxu0 0.0
  %271 = vmatmul.mubr.f32.gmra.mrb[0].mxu0 %v180
  %v272 = vpop.f32.mrb[0].mxu0
  %v273 = vadd.f32 %v140, %v272
  %v274 = vpop.f32.mrb[0].mxu0
  %275 = vmatprep.mubr.f32.mxu0 0.0
  %276 = vmatmul.mubr.f32.gmra.mrb[0].mxu0 %v183
  %v277 = vpop.f32.mrb[0].mxu0
  %v278 = vadd.f32 %v145, %v277
  %v279 = vpop.f32.mrb[0].mxu0
  %280 = vmatprep.mubr.f32.mxu0 0.0
  %281 = vmatmul.mubr.f32.gmra.mrb[0].mxu0 %v186
  %v282 = vpop.f32.mrb[0].mxu0
  %v283 = vadd.f32 %v150, %v282
  %v284 = vpop.f32.mrb[0].mxu0
  %285 = vmatprep.mubr.f32.mxu0 0.0
  %286 = vmatmul.mubr.f32.gmra.mrb[0].mxu0 %v189
  %v287 = vpop.f32.mrb[0].mxu0
  %v288 = vadd.f32 %v155, %v287
  %v289 = vpop.f32.mrb[0].mxu0
  %290 = vmatprep.mubr.f32.mxu0 0.0
  %291 = vmatmul.mubr.f32.gmra.mrb[0].mxu0 %v192
  %v292 = vpop.f32.mrb[0].mxu0
  %v293 = vadd.f32 %v160, %v292
  %v294 = vpop.f32.mrb[0].mxu0
  %295 = vmatprep.mubr.f32.mxu0 0.0
  %296 = vmatmul.mubr.f32.gmra.mrb[0].mxu0 %v195
  %v297 = vpop.f32.mrb[0].mxu0
  %v298 = vadd.f32 %v165, %v297
  %v299 = vpop.f32.mrb[0].mxu0
  %300 = vmatprep.mubr.f32.mxu0 0.0
  %301 = vmatmul.mubr.f32.gmra.mrb[0].mxu0 %v198
  %v302 = vpop.f32.mrb[0].mxu0
  %v303 = vadd.f32 %v170, %v302
  %v304 = vpop.f32.mrb[0].mxu0
  %305 = vmatprep.mubr.f32.mxu0 0.0
  %306 = vmatmul.mubr.f32.gmra.mrb[0].mxu0 %v201
  %v307 = vpop.f32.mrb[0].mxu0
  %v308 = vadd.f32 %v175, %v307
  %v309 = vpop.f32.mrb[0].mxu0
  %310 = vdwg.mxu0
  %v311 = vld [vmem:[%s4] sm:$0x1]
  %v313 = vlaneseq
  %v314 = vshrl.u32 %v313, 7
  %v315 = vsub.s32 0, %v314
  %v316 = vrot.slane %v311, %v315
  %v318 = vadd.f32 %v273, %v316
  %v319 = vadd.f32 %v278, %v316
  %v320 = vadd.f32 %v283, %v316
  %v321 = vadd.f32 %v288, %v316
  %v322 = vadd.f32 %v293, %v316
  %v323 = vadd.f32 %v298, %v316
  %v324 = vadd.f32 %v303, %v316
  %v325 = vadd.f32 %v308, %v316
  %334 = vrot.lane.b32.xlu0 %v318, 127
  %v335 = vpop.permute.xlu0 %334
  %336 = vrot.lane.b32.xlu0 %v319, 127
  %v337 = vpop.permute.xlu0 %336
  %338 = vrot.lane.b32.xlu0 %v320, 127
  %v339 = vpop.permute.xlu0 %338
  %340 = vrot.lane.b32.xlu0 %v321, 127
  %v341 = vpop.permute.xlu0 %340
  %342 = vrot.lane.b32.xlu0 %v322, 127
  %v343 = vpop.permute.xlu0 %342
  %344 = vrot.lane.b32.xlu0 %v323, 127
  %v345 = vpop.permute.xlu0 %344
  %346 = vrot.lane.b32.xlu0 %v324, 127
  %v347 = vpop.permute.xlu0 %346
  %348 = vrot.lane.b32.xlu0 %v325, 127
  %v349 = vpop.permute.xlu0 %348
  %v358 = vmax.f32 %v318, %v335
  %v359 = vmax.f32 %v319, %v337
  %v360 = vmax.f32 %v320, %v339
  %v361 = vmax.f32 %v321, %v341
  %v362 = vmax.f32 %v322, %v343
  %v363 = vmax.f32 %v323, %v345
  %v364 = vmax.f32 %v324, %v347
  %v365 = vmax.f32 %v325, %v349
  %v366 = vsub.f32 %v318, %v358
  %v367 = vsub.f32 %v319, %v359
  %v368 = vsub.f32 %v320, %v360
  %v369 = vsub.f32 %v321, %v361
  %v370 = vsub.f32 %v322, %v362
  %v371 = vsub.f32 %v323, %v363
  %v372 = vsub.f32 %v324, %v364
  %v373 = vsub.f32 %v325, %v365
  %v374 = vmul.f32 %v366, 1.442695
  %v375 = vpow.pop %v374
  %v376 = vmul.f32 %v367, 1.442695
  %v377 = vpow.pop %v376
  %v378 = vmul.f32 %v368, 1.442695
  %v379 = vpow.pop %v378
  %v380 = vmul.f32 %v369, 1.442695
  %v381 = vpow.pop %v380
  %v382 = vmul.f32 %v370, 1.442695
  %v383 = vpow.pop %v382
  %v384 = vmul.f32 %v371, 1.442695
  %v385 = vpow.pop %v384
  %v386 = vmul.f32 %v372, 1.442695
  %v387 = vpow.pop %v386
  %v388 = vmul.f32 %v373, 1.442695
  %v389 = vpow.pop %v388
  %398 = vrot.lane.b32.xlu0 %v358, 1
  %v399 = vpop.permute.xlu0 %398
  %400 = vrot.lane.b32.xlu0 %v359, 1
  %v401 = vpop.permute.xlu0 %400
  %402 = vrot.lane.b32.xlu0 %v360, 1
  %v403 = vpop.permute.xlu0 %402
  %404 = vrot.lane.b32.xlu0 %v361, 1
  %v405 = vpop.permute.xlu0 %404
  %406 = vrot.lane.b32.xlu0 %v362, 1
  %v407 = vpop.permute.xlu0 %406
  %408 = vrot.lane.b32.xlu0 %v363, 1
  %v409 = vpop.permute.xlu0 %408
  %410 = vrot.lane.b32.xlu0 %v364, 1
  %v411 = vpop.permute.xlu0 %410
  %412 = vrot.lane.b32.xlu0 %v365, 1
  %v413 = vpop.permute.xlu0 %412
  %v422 = vsub.f32 %v318, %v399
  %v423 = vsub.f32 %v319, %v401
  %v424 = vsub.f32 %v320, %v403
  %v425 = vsub.f32 %v321, %v405
  %v426 = vsub.f32 %v322, %v407
  %v427 = vsub.f32 %v323, %v409
  %v428 = vsub.f32 %v324, %v411
  %v429 = vsub.f32 %v325, %v413
  %v430 = vmul.f32 %v422, 1.442695
  %v431 = vpow.pop %v430
  %v432 = vmul.f32 %v423, 1.442695
  %v433 = vpow.pop %v432
  %v434 = vmul.f32 %v424, 1.442695
  %v435 = vpow.pop %v434
  %v436 = vmul.f32 %v425, 1.442695
  %v437 = vpow.pop %v436
  %v438 = vmul.f32 %v426, 1.442695
  %v439 = vpow.pop %v438
  %v440 = vmul.f32 %v427, 1.442695
  %v441 = vpow.pop %v440
  %v442 = vmul.f32 %v428, 1.442695
  %v443 = vpow.pop %v442
  %v444 = vmul.f32 %v429, 1.442695
  %v445 = vpow.pop %v444
  %454 = vrot.lane.b32.xlu0 %v431, 127
  %v455 = vpop.permute.xlu0 %454
  %456 = vrot.lane.b32.xlu0 %v433, 127
  %v457 = vpop.permute.xlu0 %456
  %458 = vrot.lane.b32.xlu0 %v435, 127
  %v459 = vpop.permute.xlu0 %458
  %460 = vrot.lane.b32.xlu0 %v437, 127
  %v461 = vpop.permute.xlu0 %460
  %462 = vrot.lane.b32.xlu0 %v439, 127
  %v463 = vpop.permute.xlu0 %462
  %464 = vrot.lane.b32.xlu0 %v441, 127
  %v465 = vpop.permute.xlu0 %464
  %466 = vrot.lane.b32.xlu0 %v443, 127
  %v467 = vpop.permute.xlu0 %466
  %468 = vrot.lane.b32.xlu0 %v445, 127
  %v469 = vpop.permute.xlu0 %468
  %v478 = vadd.f32 %v375, %v455
  %v479 = vadd.f32 %v377, %v457
  %v480 = vadd.f32 %v379, %v459
  %v481 = vadd.f32 %v381, %v461
  %v482 = vadd.f32 %v383, %v463
  %v483 = vadd.f32 %v385, %v465
  %v484 = vadd.f32 %v387, %v467
  %v485 = vadd.f32 %v389, %v469
  %v486 = vlog2.pop %v478
  %v487 = vmul.f32 %v486, 0.6931472
  %v488 = vlog2.pop %v479
  %v489 = vmul.f32 %v488, 0.6931472
  %v490 = vlog2.pop %v480
  %v491 = vmul.f32 %v490, 0.6931472
  %v492 = vlog2.pop %v481
  %v493 = vmul.f32 %v492, 0.6931472
  %v494 = vlog2.pop %v482
  %v495 = vmul.f32 %v494, 0.6931472
  %v496 = vlog2.pop %v483
  %v497 = vmul.f32 %v496, 0.6931472
  %v498 = vlog2.pop %v484
  %v499 = vmul.f32 %v498, 0.6931472
  %v500 = vlog2.pop %v485
  %v501 = vmul.f32 %v500, 0.6931472
  %v502 = vadd.f32 %v358, %v487
  %v503 = vadd.f32 %v359, %v489
  %v504 = vadd.f32 %v360, %v491
  %v505 = vadd.f32 %v361, %v493
  %v506 = vadd.f32 %v362, %v495
  %v507 = vadd.f32 %v363, %v497
  %v508 = vadd.f32 %v364, %v499
  %v509 = vadd.f32 %v365, %v501
  %510 = vst.msk [vmem:[%s6] sm:$0xff] %vm44, %v318
  %511 = vst.msk [vmem:[%s6 + $0x8] sm:$0xff] %vm44, %v319
  %512 = vst.msk [vmem:[%s6 + $0x10] sm:$0xff] %vm44, %v320
  %513 = vst.msk [vmem:[%s6 + $0x18] sm:$0xff] %vm44, %v321
  %514 = vst.msk [vmem:[%s6 + $0x20] sm:$0xff] %vm44, %v322
  %515 = vst.msk [vmem:[%s6 + $0x28] sm:$0xff] %vm44, %v323
  %516 = vst.msk [vmem:[%s6 + $0x30] sm:$0xff] %vm44, %v324
  %517 = vst.msk [vmem:[%s6 + $0x38] sm:$0xff] %vm44, %v325
  %519 = vset.pattern.permute.xlu0 10
  %520 = vperm.xlu0 %519, %v502
  %v521 = vpop.permute.xlu0 %520
  %524 = vset.pattern.permute.xlu0 10
  %525 = vperm.xlu0 %524, %v503
  %v526 = vpop.permute.xlu0 %525
  %529 = vset.pattern.permute.xlu0 10
  %530 = vperm.xlu0 %529, %v504
  %v531 = vpop.permute.xlu0 %530
  %534 = vset.pattern.permute.xlu0 10
  %535 = vperm.xlu0 %534, %v505
  %v536 = vpop.permute.xlu0 %535
  %539 = vset.pattern.permute.xlu0 10
  %540 = vperm.xlu0 %539, %v506
  %v541 = vpop.permute.xlu0 %540
  %544 = vset.pattern.permute.xlu0 10
  %545 = vperm.xlu0 %544, %v507
  %v546 = vpop.permute.xlu0 %545
  %549 = vset.pattern.permute.xlu0 10
  %550 = vperm.xlu0 %549, %v508
  %v551 = vpop.permute.xlu0 %550
  %554 = vset.pattern.permute.xlu0 10
  %555 = vperm.xlu0 %554, %v509
  %v556 = vpop.permute.xlu0 %555
  %v558 = vsub.f32 %v318, %v521
  %v559 = vsub.f32 %v319, %v526
  %v560 = vsub.f32 %v320, %v531
  %v561 = vsub.f32 %v321, %v536
  %v562 = vsub.f32 %v322, %v541
  %v563 = vsub.f32 %v323, %v546
  %v564 = vsub.f32 %v324, %v551
  %v565 = vsub.f32 %v325, %v556
  %574 = vrot.lane.b32.xlu0 %v558, 118
  %v575 = vpop.permute.xlu0 %574
  %576 = vrot.lane.b32.xlu0 %v559, 118
  %v577 = vpop.permute.xlu0 %576
  %578 = vrot.lane.b32.xlu0 %v560, 118
  %v579 = vpop.permute.xlu0 %578
  %580 = vrot.lane.b32.xlu0 %v561, 118
  %v581 = vpop.permute.xlu0 %580
  %582 = vrot.lane.b32.xlu0 %v562, 118
  %v583 = vpop.permute.xlu0 %582
  %584 = vrot.lane.b32.xlu0 %v563, 118
  %v585 = vpop.permute.xlu0 %584
  %586 = vrot.lane.b32.xlu0 %v564, 118
  %v587 = vpop.permute.xlu0 %586
  %588 = vrot.lane.b32.xlu0 %v565, 118
  %v589 = vpop.permute.xlu0 %588
  %vm598 = vcmask 15360
  %599 = vst.msk [vmem:[%s5] sm:$0xff] %vm598, %v575
  %600 = vst.msk [vmem:[%s5 + $0x8] sm:$0xff] %vm598, %v577
  %601 = vst.msk [vmem:[%s5 + $0x10] sm:$0xff] %vm598, %v579
  %602 = vst.msk [vmem:[%s5 + $0x18] sm:$0xff] %vm598, %v581
  %603 = vst.msk [vmem:[%s5 + $0x20] sm:$0xff] %vm598, %v583
  %604 = vst.msk [vmem:[%s5 + $0x28] sm:$0xff] %vm598, %v585
  %605 = vst.msk [vmem:[%s5 + $0x30] sm:$0xff] %vm598, %v587
  %606 = vst.msk [vmem:[%s5 + $0x38] sm:$0xff] %vm598, %v589
  // Predicated region
  $region22: #{tpu_custom_call.1} parent=0 // pred_check
    _
  $region23: #{tpu_custom_call.1} parent=0 // pred_check_branch
    %608 = sbr.rel (0) target = $region25
  $region24: #{tpu_custom_call.1} parent=0 // pred_region
    _
  $region25: #{tpu_custom_call.1} parent=0 // pred_fallthru
    _
  // Predicated region
  $region26: #{tpu_custom_call.1} parent=0 // pred_check
    _
  $region27: #{tpu_custom_call.1} parent=0 // pred_check_branch
    %610 = sbr.rel (0) target = $region29
  $region28: #{tpu_custom_call.1} parent=0 // pred_region
    _
  $region29: #{tpu_custom_call.1} parent=0 // pred_fallthru
    _
  // Predicated region
  $region30: #{tpu_custom_call.1} parent=0 // pred_check
    _
  $region31: #{tpu_custom_call.1} parent=0 // pred_check_branch
    %612 = sbr.rel (0) target = $region33
  $region32: #{tpu_custom_call.1} parent=0 // pred_region
    _
  $region33: #{tpu_custom_call.1} parent=0 // pred_fallthru
    _
  // Predicated region
  $region34: #{tpu_custom_call.1} parent=0 // pred_check
    _
  $region35: #{tpu_custom_call.1} parent=0 // pred_check_branch
    %614 = sbr.rel (0) target = $region37
  $region36: #{tpu_custom_call.1} parent=0 // pred_region
    _
  $region37: #{tpu_custom_call.1} parent=0 // pred_fallthru
    _

</llo_original>
